<compile_context>
chip_gen: v7x
topology: tpu7x:2x2x1
jax: 0.10.0
libtpu: 0.0.40
codegen_flags: <defaults>
</compile_context>

<pallas_src>
import jax
import jax.numpy as jnp
from jax.experimental import pallas as pl
from jax.experimental.pallas import tpu as pltpu


def _round_up(x, m):
    return ((x + m - 1) // m) * m


# ----------------------------- Pallas kernels ------------------------------ #

def _conv_core(xv, w_ref, b_ref, y_ref, s_ref, ss_ref):
    """Shared conv body.

    xv:     (H, WC)  lane-dense activated input (W*Cin flattened onto lanes, zero lane-pad ok)
    w_ref:  (3*WC, WCout) banded weight (rows = [h-1 block; h block; h+1 block])
    b_ref:  (1, WCout)    bias tiled to the lane-dense output layout
    y_ref:  (1, H, WCout) raw conv output (lane-dense)
    s_ref / ss_ref: (1, 1, WCout) per-image channel sum / sum-of-squares (for BN stats)
    """
    H, WC = xv.shape

    # Row halo (+/-1 in H) as 0/1 shift-matrix matmuls: exact, no sublane relayout ops.
    r = jax.lax.broadcasted_iota(jnp.int32, (H, H), 0)
    c = jax.lax.broadcasted_iota(jnp.int32, (H, H), 1)
    shift_down = (r == c + 1).astype(jnp.float32)   # row h <- row h-1 (row 0 becomes zero pad)
    shift_up = (r == c - 1).astype(jnp.float32)     # row h <- row h+1 (row H-1 becomes zero pad)
    p_top = jnp.dot(shift_down, xv, preferred_element_type=jnp.float32)
    p_bot = jnp.dot(shift_up, xv, preferred_element_type=jnp.float32)

    # im2col along lanes; every piece is a multiple of 128 lanes so the concat is aligned.
    patches = jnp.concatenate([p_top, xv, p_bot], axis=1)          # (H, 3*WC)

    # Single MXU contraction against the banded weight; bias folded into the epilogue.
    y = jnp.dot(patches, w_ref[...], preferred_element_type=jnp.float32) + b_ref[...]

    y_ref[0] = y.astype(y_ref.dtype)                                # lane-dense 128-wide store
    # Per-image sums so BatchNorm stats never re-read y from HBM (final combine in wrapper).
    s_ref[0] = jnp.sum(y, axis=0, keepdims=True)
    ss_ref[0] = jnp.sum(y * y, axis=0, keepdims=True)


def _conv_kernel(x_ref, w_ref, b_ref, y_ref, s_ref, ss_ref):
    # Layer 1: raw input, no preceding BN/ReLU.
    _conv_core(x_ref[0].astype(jnp.float32), w_ref, b_ref, y_ref, s_ref, ss_ref)


def _bn_relu_conv_kernel(x_ref, sin_ref, tin_ref, w_ref, b_ref, y_ref, s_ref, ss_ref):
    # Layer 2: previous layer's folded BN + ReLU fused into the input load path.
    xv = jnp.maximum(x_ref[0] * sin_ref[...] + tin_ref[...], 0.0)
    _conv_core(xv, w_ref, b_ref, y_ref, s_ref, ss_ref)


def _bn_relu_kernel(x_ref, s_ref, t_ref, o_ref):
    # Fused per-channel affine (folded BatchNorm) + ReLU on the lane-dense layout.
    o_ref[...] = jnp.maximum(x_ref[...] * s_ref[...] + t_ref[...], 0.0).astype(o_ref.dtype)


# ------------------------------ Wrappers ----------------------------------- #

_COMPILER_PARAMS = pltpu.CompilerParams(
    dimension_semantics=("parallel",),          # N=2 -> both v7x TensorCores busy
    vmem_limit_bytes=32 * 1024 * 1024,          # explicit; safe on v5e/v6e/v7x
)


def conv3x3_bn_stats(x_ld, w_banded, b_tiled, scale_in=None, shift_in=None):
    """[optional fused BN+ReLU on input] -> 3x3 same conv -> (y, channel sum, sum of squares).

    x_ld: (N, H, WC) lane-dense input; w_banded: (3*WC, WCout); b_tiled: (1, WCout).
    """
    N, H, WC = x_ld.shape
    WCout = w_banded.shape[1]
    assert w_banded.shape[0] == 3 * WC

    fused = scale_in is not None
    kernel = _bn_relu_conv_kernel if fused else _conv_kernel

    in_specs = [pl.BlockSpec((1, H, WC), lambda n: (n, 0, 0))]
    args = [x_ld]
    if fused:
        in_specs += [pl.BlockSpec((1, WC), lambda n: (0, 0)),
                     pl.BlockSpec((1, WC), lambda n: (0, 0))]
        args += [scale_in, shift_in]
    in_specs += [pl.BlockSpec((3 * WC, WCout), lambda n: (0, 0)),
                 pl.BlockSpec((1, WCout), lambda n: (0, 0))]
    args += [w_banded, b_tiled]

    y, s, ss = pl.pallas_call(
        kernel,
        out_shape=(jax.ShapeDtypeStruct((N, H, WCout), jnp.float32),
                   jax.ShapeDtypeStruct((N, 1, WCout), jnp.float32),
                   jax.ShapeDtypeStruct((N, 1, WCout), jnp.float32)),
        grid_spec=pltpu.PrefetchScalarGridSpec(
            num_scalar_prefetch=0,
            grid=(N,),
            in_specs=in_specs,
            out_specs=(pl.BlockSpec((1, H, WCout), lambda n: (n, 0, 0)),
                       pl.BlockSpec((1, 1, WCout), lambda n: (n, 0, 0)),
                       pl.BlockSpec((1, 1, WCout), lambda n: (n, 0, 0)))),
        compiler_params=_COMPILER_PARAMS,
    )(*args)
    return y, s, ss


def bn_relu(x_ld, scale_tiled, shift_tiled):
    """Fused folded-BatchNorm + ReLU on the lane-dense (N, H, W*C) layout."""
    N, H, WC = x_ld.shape
    return pl.pallas_call(
        _bn_relu_kernel,
        out_shape=jax.ShapeDtypeStruct((N, H, WC), jnp.float32),
        grid_spec=pltpu.PrefetchScalarGridSpec(
            num_scalar_prefetch=0,
            grid=(N,),
            in_specs=[pl.BlockSpec((1, H, WC), lambda n: (n, 0, 0)),
                      pl.BlockSpec((1, WC), lambda n: (0, 0)),
                      pl.BlockSpec((1, WC), lambda n: (0, 0))],
            out_specs=pl.BlockSpec((1, H, WC), lambda n: (n, 0, 0))),
        compiler_params=_COMPILER_PARAMS,
    )(x_ld, scale_tiled, shift_tiled)


def _banded_conv_weight(w_pt, W, lane_width):
    """PyTorch (Cout, Cin, 3, 3) weight -> (3*lane_width, W*Cout) banded matrix.

    On the lane-dense layout, row block dy multiplies the rows of the image shifted by
    dy-1; within a block, entry [w1*Cin+ci, w*Cout+co] is k[dy, w1-w+1, ci, co] when the
    column tap is in range (zero otherwise) -- this encodes both the dx taps and the
    W-direction zero padding.  Rows are zero-padded up to lane_width (lane alignment).
    """
    Cout, Cin = w_pt.shape[0], w_pt.shape[1]
    k = jnp.transpose(w_pt, (2, 3, 1, 0)).astype(jnp.float32)      # (dy, dx, Cin, Cout)
    blocks = []
    for dy in range(3):
        blk = jnp.zeros((W, Cin, W, Cout), jnp.float32)
        for dx in range(3):
            band = jnp.eye(W, k=1 - dx, dtype=jnp.float32)         # [w1, w]=1 iff w1==w+dx-1
            blk = blk + jnp.einsum("io,uw->uiwo", k[dy, dx], band)
        blk = blk.reshape(W * Cin, W * Cout)
        blk = jnp.pad(blk, ((0, lane_width - W * Cin), (0, 0)))
        blocks.append(blk)
    return jnp.concatenate(blocks, axis=0)                          # (3*lane_width, W*Cout)


def _bn_affine(s, ss, gamma, beta, count, W, C, eps):
    """Combine per-image sums into BatchNorm training-mode scale/shift (tiny O(C) work)."""
    total = s.reshape(-1, W, C).sum(axis=(0, 1))
    total_sq = ss.reshape(-1, W, C).sum(axis=(0, 1))
    mean = total / count
    # Biased variance, as PyTorch uses for normalization; f32 sums are ample at these sizes.
    var = jnp.maximum(total_sq / count - mean * mean, 0.0)
    scale = gamma * jax.lax.rsqrt(var + eps)
    shift = beta - mean * scale
    return scale, shift


def double_conv(x_nchw, params, eps=1e-5):
    """Forward pass of DoubleConv. Input/output in NCHW (PyTorch convention)."""
    N, Cin, H, W = x_nchw.shape
    Cout = params["gamma1"].shape[0]
    count = N * H * W

    # NCHW -> lane-dense (N, H, W*Cin), zero lane-padded to a multiple of 128 (tiny input).
    x = jnp.transpose(x_nchw, (0, 2, 3, 1)).astype(jnp.float32).reshape(N, H, W * Cin)
    lane1 = _round_up(W * Cin, 128)
    if lane1 > W * Cin:
        x = jnp.pad(x, ((0, 0), (0, 0), (0, lane1 - W * Cin)))

    # Layer 1: conv + BN-stats fused kernel.
    w1 = _banded_conv_weight(params["w1_pt"], W, lane1)
    b1 = jnp.tile(params["b1"], W)[None, :]
    y1, s1, ss1 = conv3x3_bn_stats(x, w1, b1)
    scale1, shift1 = _bn_affine(s1, ss1, params["gamma1"], params["beta1"], count, W, Cout, eps)

    # Layer 2: BN1+ReLU fused into the conv2 input path; conv2 also emits its BN stats.
    lane2 = W * Cout
    assert lane2 % 128 == 0, "demo assumes W*Cout is a multiple of 128 for lane-dense blocks"
    w2 = _banded_conv_weight(params["w2_pt"], W, lane2)
    b2 = jnp.tile(params["b2"], W)[None, :]
    y2, s2, ss2 = conv3x3_bn_stats(
        y1, w2, b2,
        scale_in=jnp.tile(scale1, W)[None, :],
        shift_in=jnp.tile(shift1, W)[None, :])
    scale2, shift2 = _bn_affine(s2, ss2, params["gamma2"], params["beta2"], count, W, Cout, eps)

    # Final folded-BN + ReLU (lane-dense elementwise kernel), then back to NCHW.
    out = bn_relu(y2, jnp.tile(scale2, W)[None, :], jnp.tile(shift2, W)[None, :])
    return jnp.transpose(out.reshape(N, H, W, Cout), (0, 3, 1, 2))


# ------------------------- Deterministic parameters ------------------------- #

def init_params(key, in_channels, out_channels):
    k1, k2, k3, k4 = jax.random.split(key, 4)
    return {
        "w1_pt": 0.1 * jax.random.normal(k1, (out_channels, in_channels, 3, 3), jnp.float32),
        "w2_pt": 0.1 * jax.random.normal(k2, (out_channels, out_channels, 3, 3), jnp.float32),
        "b1": 0.1 * jax.random.normal(k3, (out_channels,), jnp.float32),
        "b2": 0.1 * jax.random.normal(k4, (out_channels,), jnp.float32),
        "gamma1": jnp.ones((out_channels,), jnp.float32),
        "beta1": jnp.zeros((out_channels,), jnp.float32),
        "gamma2": jnp.ones((out_channels,), jnp.float32),
        "beta2": jnp.zeros((out_channels,), jnp.float32),
    }


# --------------------------- Pure-JAX reference ----------------------------- #

def double_conv_ref(x_nchw, params, eps=1e-5):
    x = x_nchw.astype(jnp.float32)
    for i in (1, 2):
        w_pt = params[f"w{i}_pt"]
        b = params[f"b{i}"].reshape(-1)
        gamma, beta = params[f"gamma{i}"], params[f"beta{i}"]
        y = jax.lax.conv_general_dilated(
            x, w_pt, window_strides=(1, 1), padding="SAME",
            dimension_numbers=("NCHW", "OIHW", "NCHW"))
        y = y + b[None, :, None, None]
        mean = jnp.mean(y, axis=(0, 2, 3), keepdims=True)
        var = jnp.var(y, axis=(0, 2, 3), keepdims=True)
        y = (y - mean) / jnp.sqrt(var + eps)
        y = y * gamma[None, :, None, None] + beta[None, :, None, None]
        x = jnp.maximum(y, 0.0)
    return x


# ---------------------------------- Main ------------------------------------ #

if __name__ == "__main__":
    key = jax.random.PRNGKey(0)
    kx, kp = jax.random.split(key)

    N, Cin, Cout, H, W = 2, 4, 8, 16, 16
    x = jax.random.normal(kx, (N, Cin, H, W), jnp.float32)   # NCHW, like PyTorch
    params = init_params(kp, Cin, Cout)

    out = jax.block_until_ready(double_conv(x, params))
    ref = jax.block_until_ready(double_conv_ref(x, params))

    assert out.shape == (N, Cout, H, W)
    assert jnp.allclose(out, ref, atol=2e-4, rtol=2e-4)

    print("KERNEL_OK")
</pallas_src>

<mosaic_0001>
module attributes {stable_mosaic.version = 11 : i64} {
  func.func @_conv_kernel(%arg0: i32, %arg1: memref<1x16x128xf32, #tpu.memory_space<vmem>>, %arg2: memref<384x128xf32, #tpu.memory_space<vmem>>, %arg3: memref<1x128xf32, #tpu.memory_space<vmem>>, %arg4: memref<1x16x128xf32, #tpu.memory_space<vmem>>, %arg5: memref<1x1x128xf32, #tpu.memory_space<vmem>>, %arg6: memref<1x1x128xf32, #tpu.memory_space<vmem>>) attributes {dimension_semantics = [#tpu.dimension_semantics<parallel>], iteration_bounds = array<i64: 2>, scalar_prefetch = 0 : i64, scratch_operands = 0 : i64, tpu.core_type = #tpu.core_type<tc>, window_params = [{transform_indices = @transform_0, window_bounds = array<i64: 1, 16, 128>}, {pipeline_mode = #tpu.pipeline_mode<synchronous>, transform_indices = @transform_1, window_bounds = array<i64: 384, 128>}, {pipeline_mode = #tpu.pipeline_mode<synchronous>, transform_indices = @transform_2, window_bounds = array<i64: 1, 128>}, {transform_indices = @transform_3, window_bounds = array<i64: 1, 16, 128>}, {transform_indices = @transform_4, window_bounds = array<i64: 1, 1, 128>}, {transform_indices = @transform_5, window_bounds = array<i64: 1, 1, 128>}]} {
    %c0 = arith.constant 0 : index
    %c0_0 = arith.constant 0 : index
    %c0_1 = arith.constant 0 : index
    %0 = vector.load %arg1[%c0, %c0_0, %c0_1] : memref<1x16x128xf32, #tpu.memory_space<vmem>>, vector<1x16x128xf32>
    %1 = vector.shape_cast %0 : vector<1x16x128xf32> to vector<16x128xf32>
    %2 = tpu.iota {dimensions = array<i32: 0>} : vector<16x16xi32>
    %3 = tpu.iota {dimensions = array<i32: 1>} : vector<16x16xi32>
    %c1_i32 = arith.constant 1 : i32
    %4 = vector.broadcast %c1_i32 : i32 to vector<16x16xi32>
    %5 = arith.addi %3, %4 : vector<16x16xi32>
    %6 = arith.cmpi eq, %2, %5 : vector<16x16xi32>
    %7 = arith.extui %6 : vector<16x16xi1> to vector<16x16xi32>
    %8 = arith.sitofp %7 : vector<16x16xi32> to vector<16x16xf32>
    %c1_i32_2 = arith.constant 1 : i32
    %9 = vector.broadcast %c1_i32_2 : i32 to vector<16x16xi32>
    %10 = arith.subi %3, %9 : vector<16x16xi32>
    %11 = arith.cmpi eq, %2, %10 : vector<16x16xi32>
    %12 = arith.extui %11 : vector<16x16xi1> to vector<16x16xi32>
    %13 = arith.sitofp %12 : vector<16x16xi32> to vector<16x16xf32>
    %cst = arith.constant dense<0.000000e+00> : vector<16x128xf32>
    %14 = tpu.matmul %8, %1, %cst {dimension_numbers = #tpu.dot_dimension_numbers<[1], [0], [0], [1], [0, 0, 1, 1], [], []>} : vector<16x16xf32>, vector<16x128xf32>, vector<16x128xf32> -> vector<16x128xf32>
    %cst_3 = arith.constant dense<0.000000e+00> : vector<16x128xf32>
    %15 = tpu.matmul %13, %1, %cst_3 {dimension_numbers = #tpu.dot_dimension_numbers<[1], [0], [0], [1], [0, 0, 1, 1], [], []>} : vector<16x16xf32>, vector<16x128xf32>, vector<16x128xf32> -> vector<16x128xf32>
    %16 = tpu.concatenate %14, %1, %15 in 1 : vector<16x128xf32>, vector<16x128xf32>, vector<16x128xf32> -> vector<16x384xf32>
    %c0_4 = arith.constant 0 : index
    %c0_5 = arith.constant 0 : index
    %17 = vector.load %arg2[%c0_4, %c0_5] : memref<384x128xf32, #tpu.memory_space<vmem>>, vector<384x128xf32>
    %cst_6 = arith.constant dense<0.000000e+00> : vector<16x128xf32>
    %18 = tpu.matmul %16, %17, %cst_6 {dimension_numbers = #tpu.dot_dimension_numbers<[1], [0], [0], [1], [0, 0, 1, 1], [], []>} : vector<16x384xf32>, vector<384x128xf32>, vector<16x128xf32> -> vector<16x128xf32>
    %c0_7 = arith.constant 0 : index
    %c0_8 = arith.constant 0 : index
    %19 = vector.load %arg3[%c0_7, %c0_8] : memref<1x128xf32, #tpu.memory_space<vmem>>, vector<1x128xf32>
    %20 = vector.broadcast %19 : vector<1x128xf32> to vector<16x128xf32>
    %21 = arith.addf %18, %20 : vector<16x128xf32>
    %c0_9 = arith.constant 0 : index
    %c0_10 = arith.constant 0 : index
    %c0_11 = arith.constant 0 : index
    %22 = vector.load %arg4[%c0_9, %c0_10, %c0_11] : memref<1x16x128xf32, #tpu.memory_space<vmem>>, vector<1x16x128xf32>
    %23 = vector.shape_cast %22 : vector<1x16x128xf32> to vector<16x128xf32>
    %24 = vector.shape_cast %21 : vector<16x128xf32> to vector<1x16x128xf32>
    tpu.vector_store %arg4[%c0_9, %c0_10, %c0_11], %24 {strides = array<i32>} : memref<1x16x128xf32, #tpu.memory_space<vmem>>, vector<1x16x128xf32>,
    %cst_12 = arith.constant dense<0.000000e+00> : vector<128xf32>
    %25 = vector.multi_reduction <add>, %21, %cst_12 [0] : vector<16x128xf32> to vector<128xf32>
    %26 = vector.shape_cast %25 : vector<128xf32> to vector<1x128xf32>
    %c0_13 = arith.constant 0 : index
    %c0_14 = arith.constant 0 : index
    %c0_15 = arith.constant 0 : index
    %27 = vector.load %arg5[%c0_13, %c0_14, %c0_15] : memref<1x1x128xf32, #tpu.memory_space<vmem>>, vector<1x1x128xf32>
    %28 = vector.shape_cast %27 : vector<1x1x128xf32> to vector<1x128xf32>
    %29 = vector.shape_cast %26 : vector<1x128xf32> to vector<1x1x128xf32>
    tpu.vector_store %arg5[%c0_13, %c0_14, %c0_15], %29 {strides = array<i32>} : memref<1x1x128xf32, #tpu.memory_space<vmem>>, vector<1x1x128xf32>,
    %30 = arith.mulf %21, %21 : vector<16x128xf32>
    %cst_16 = arith.constant dense<0.000000e+00> : vector<128xf32>
    %31 = vector.multi_reduction <add>, %30, %cst_16 [0] : vector<16x128xf32> to vector<128xf32>
    %32 = vector.shape_cast %31 : vector<128xf32> to vector<1x128xf32>
    %c0_17 = arith.constant 0 : index
    %c0_18 = arith.constant 0 : index
    %c0_19 = arith.constant 0 : index
    %33 = vector.load %arg6[%c0_17, %c0_18, %c0_19] : memref<1x1x128xf32, #tpu.memory_space<vmem>>, vector<1x1x128xf32>
    %34 = vector.shape_cast %33 : vector<1x1x128xf32> to vector<1x128xf32>
    %35 = vector.shape_cast %32 : vector<1x128xf32> to vector<1x1x128xf32>
    tpu.vector_store %arg6[%c0_17, %c0_18, %c0_19], %35 {strides = array<i32>} : memref<1x1x128xf32, #tpu.memory_space<vmem>>, vector<1x1x128xf32>,
    return
  }
  func.func @transform_0(%arg0: i32) -> (i32, i32, i32) {
    %c0_i32 = arith.constant 0 : i32
    %c0_i32_0 = arith.constant 0 : i32
    %c0_i32_1 = arith.constant 0 : i32
    return %arg0, %c0_i32, %c0_i32_0 : i32, i32, i32
  }
  func.func @transform_1(%arg0: i32) -> (i32, i32) {
    %c0_i32 = arith.constant 0 : i32
    %c0_i32_0 = arith.constant 0 : i32
    %c0_i32_1 = arith.constant 0 : i32
    return %c0_i32, %c0_i32_0 : i32, i32
  }
  func.func @transform_2(%arg0: i32) -> (i32, i32) {
    %c0_i32 = arith.constant 0 : i32
    %c0_i32_0 = arith.constant 0 : i32
    %c0_i32_1 = arith.constant 0 : i32
    return %c0_i32, %c0_i32_0 : i32, i32
  }
  func.func @transform_3(%arg0: i32) -> (i32, i32, i32) {
    %c0_i32 = arith.constant 0 : i32
    %c0_i32_0 = arith.constant 0 : i32
    %c0_i32_1 = arith.constant 0 : i32
    return %arg0, %c0_i32, %c0_i32_0 : i32, i32, i32
  }
  func.func @transform_4(%arg0: i32) -> (i32, i32, i32) {
    %c0_i32 = arith.constant 0 : i32
    %c0_i32_0 = arith.constant 0 : i32
    %c0_i32_1 = arith.constant 0 : i32
    return %arg0, %c0_i32, %c0_i32_0 : i32, i32, i32
  }
  func.func @transform_5(%arg0: i32) -> (i32, i32, i32) {
    %c0_i32 = arith.constant 0 : i32
    %c0_i32_0 = arith.constant 0 : i32
    %c0_i32_1 = arith.constant 0 : i32
    return %arg0, %c0_i32, %c0_i32_0 : i32, i32, i32
  }
}

</mosaic_0001>

<llo_original>
// kernel: tpu_custom_call.1
$region0: #{tpu_custom_call.1}
  #allocation0 [shape = 'u32[]', space=smem, size = 0x4, offset = 0x4, fixed_abs, tag = 'smem constant byte address 0x4 - core index']
  #allocation1 [shape = 'u32[144,128]{1,0:T(1,128)}', space=vmem, size = 0x12000, scoped, tag = 'internal scratch']
  %s0 = inlined_call_operand.hbm [shape: f32[2,16,128], index: 0, kind: input, shape index: {}]
  %s1 = inlined_call_operand.hbm [shape: f32[384,128], index: 1, kind: input, shape index: {}]
  %s2 = inlined_call_operand.vmem [shape: f32[1,128], index: 2, kind: input, shape index: {}]
  %s3 = inlined_call_operand.hbm [shape: f32[2,16,128], index: 3, kind: output, shape index: {0}]
  %s4 = inlined_call_operand.hbm [shape: f32[2,1,128], index: 4, kind: output, shape index: {1}]
  %s5 = inlined_call_operand.hbm [shape: f32[2,1,128], index: 5, kind: output, shape index: {2}]
  %6 = xla_tuple %s3, %s4, %s5
  %s7 = sld [smem:[#allocation0]]
  $region69: #{tpu_custom_call.1} parent=0
    _
  %s9 = ssub.s32 1, %s7
  %s10 = scalar_select 0, %s9, %s7
  $region1: #{tpu_custom_call.1} parent=0
    #allocation2 [shape = 'u8[16384]{0}', space=vmem, size = 0x4000, scoped, tag = 'input window, operand 0']
    #allocation3 [shape = 's32[2]{0}', space=sflag, size = 0x8, scoped, tag = 'scoped memory for tpu_custom_call.1']
    #allocation4 [shape = 's32[2]{0}', space=sflag, size = 0x8, scoped, tag = 'scoped memory for tpu_custom_call.1']
    #allocation5 [shape = 'u8[196608]{0}', space=vmem, size = 0x30000, scoped, tag = 'input window, operand 1, single buffered']
    #allocation6 [shape = 's32[1]{0}', space=sflag, size = 0x4, scoped, tag = 'scoped memory for tpu_custom_call.1']
    #allocation7 [shape = 'u8[16384]{0}', space=vmem, size = 0x4000, scoped, tag = 'output window, operand 0']
    #allocation8 [shape = 'u8[1024]{0}', space=vmem, size = 0x400, scoped, tag = 'output window, operand 1']
    #allocation9 [shape = 's32[2]{0}', space=sflag, size = 0x8, scoped, tag = 'scoped memory for tpu_custom_call.1']
    #allocation10 [shape = 'u8[1024]{0}', space=vmem, size = 0x400, scoped, tag = 'output window, operand 2']
    %11 = vsyncpa [#allocation3], 0
    %s12 = scalar_lea.sflag [#allocation3], 1
    %13 = vsyncpa %s12, 0
    %14 = vsyncpa [#allocation6], 0
    %15 = vsyncpa [#allocation4], 0
    %s16 = scalar_lea.sflag [#allocation4], 1
    %17 = vsyncpa %s16, 0
    %18 = vsyncpa [#allocation9], 0
    %s19 = scalar_lea.sflag [#allocation9], 1
    %20 = vsyncpa %s19, 0
    loop: start=0, step=1, limit=4
    $region2: #{tpu_custom_call.1} parent=1 // loop_pre_header
      _
    $region3: #{tpu_custom_call.1} parent=1 // loop_header
      %s22 = sphi 0, %s26
      %p23 = scmp.ge.s32.totalorder %s22, 4
      %s32 = sphi 0, %s34
      %s35 = sphi 0, %s32
      %s36 = sphi 0, %s35
      %s52 = sphi 0, %s36
      %s56 = sphi 0, %s56
      %s58 = sphi 0, %s56
      %s59 = sphi 0, %s58
      %s73 = sphi 0, %s59
      %s77 = sphi 0, %s77
      %s79 = sphi 0, %s77
      %s80 = sphi 0, %s79
      %s94 = sphi 0, %s80
      %s100 = sphi 0, %s102
      %s103 = sphi 0, %s100
      %s104 = sphi 0, %s103
      %s120 = sphi 0, %s104
      %s126 = sphi 0, %s128
      %s129 = sphi 0, %s126
      %s130 = sphi 0, %s129
      %s146 = sphi 0, %s130
      %s152 = sphi 0, %s154
      %s155 = sphi 0, %s152
      %s156 = sphi 0, %s155
      %s172 = sphi 0, %s156
    $region4: #{tpu_custom_call.1} parent=1 // loop_header_branch
      %25 = sbr.rel (%p23) target = $region8
    $region5: #{tpu_custom_call.1} parent=1 // loop_body
      %s27 = ssub.s32 %s22, 1
      %s28 = ssub.s32 %s22, 2
      %s29 = sadd.s32 %s22, 1
      %s30 = ssub.s32 %s22, %s29
      %p31 = scmp.eq.s32.totalorder %s30, 0
      %s33 = sadd.s32 %s32, 1
      %s34 = scalar_select %p31, %s32, %s33
      %p37 = pneg %p31
      %p38 = scmp.eq.s32.totalorder %s22, 1
      %p39 = por %p37, %p38
      %p40 = scmp.ne.s32.totalorder %s32, %s35
      %p41 = scmp.eq.s32.totalorder %s22, 0
      %p42 = por %p40, %p41
      %p43 = scmp.ne.s32.totalorder %s32, %s35
      %p44 = scmp.eq.s32.totalorder %s27, 1
      %p45 = por %p43, %p44
      %p46 = scmp.ne.s32.totalorder %s35, %s36
      %p47 = scmp.eq.s32.totalorder %s27, 0
      %p48 = por %p46, %p47
      %p49 = scmp.ne.s32.totalorder %s35, %s36
      %p50 = scmp.eq.s32.totalorder %s28, 1
      %p51 = por %p49, %p50
      %p53 = scmp.ne.s32.totalorder %s36, %s52
      %p54 = scmp.eq.s32.totalorder %s28, 0
      %p55 = por %p53, %p54
      %s57 = sadd.s32 %s56, 1
      %p60 = scmp.eq.s32.totalorder %s22, 1
      %p61 = scmp.ne.s32.totalorder %s56, %s58
      %p62 = scmp.eq.s32.totalorder %s22, 0
      %p63 = por %p61, %p62
      %p64 = scmp.ne.s32.totalorder %s56, %s58
      %p65 = scmp.eq.s32.totalorder %s27, 1
      %p66 = por %p64, %p65
      %p67 = scmp.ne.s32.totalorder %s58, %s59
      %p68 = scmp.eq.s32.totalorder %s27, 0
      %p69 = por %p67, %p68
      %p70 = scmp.ne.s32.totalorder %s58, %s59
      %p71 = scmp.eq.s32.totalorder %s28, 1
      %p72 = por %p70, %p71
      %p74 = scmp.ne.s32.totalorder %s59, %s73
      %p75 = scmp.eq.s32.totalorder %s28, 0
      %p76 = por %p74, %p75
      %s78 = sadd.s32 %s77, 1
      %p81 = scmp.eq.s32.totalorder %s22, 1
      %p82 = scmp.ne.s32.totalorder %s77, %s79
      %p83 = scmp.eq.s32.totalorder %s22, 0
      %p84 = por %p82, %p83
      %p85 = scmp.ne.s32.totalorder %s77, %s79
      %p86 = scmp.eq.s32.totalorder %s27, 1
      %p87 = por %p85, %p86
      %p88 = scmp.ne.s32.totalorder %s79, %s80
      %p89 = scmp.eq.s32.totalorder %s27, 0
      %p90 = por %p88, %p89
      %p91 = scmp.ne.s32.totalorder %s79, %s80
      %p92 = scmp.eq.s32.totalorder %s28, 1
      %p93 = por %p91, %p92
      %p95 = scmp.ne.s32.totalorder %s80, %s94
      %p96 = scmp.eq.s32.totalorder %s28, 0
      %p97 = por %p95, %p96
      %s98 = ssub.s32 %s22, %s29
      %p99 = scmp.eq.s32.totalorder %s98, 0
      %s101 = sadd.s32 %s100, 1
      %s102 = scalar_select %p99, %s100, %s101
      %p105 = pneg %p99
      %p106 = scmp.eq.s32.totalorder %s22, 1
      %p107 = por %p105, %p106
      %p108 = scmp.ne.s32.totalorder %s100, %s103
      %p109 = scmp.eq.s32.totalorder %s22, 0
      %p110 = por %p108, %p109
      %p111 = scmp.ne.s32.totalorder %s100, %s103
      %p112 = scmp.eq.s32.totalorder %s27, 1
      %p113 = por %p111, %p112
      %p114 = scmp.ne.s32.totalorder %s103, %s104
      %p115 = scmp.eq.s32.totalorder %s27, 0
      %p116 = por %p114, %p115
      %p117 = scmp.ne.s32.totalorder %s103, %s104
      %p118 = scmp.eq.s32.totalorder %s28, 1
      %p119 = por %p117, %p118
      %p121 = scmp.ne.s32.totalorder %s104, %s120
      %p122 = scmp.eq.s32.totalorder %s28, 0
      %p123 = por %p121, %p122
      %s124 = ssub.s32 %s22, %s29
      %p125 = scmp.eq.s32.totalorder %s124, 0
      %s127 = sadd.s32 %s126, 1
      %s128 = scalar_select %p125, %s126, %s127
      %p131 = pneg %p125
      %p132 = scmp.eq.s32.totalorder %s22, 1
      %p133 = por %p131, %p132
      %p134 = scmp.ne.s32.totalorder %s126, %s129
      %p135 = scmp.eq.s32.totalorder %s22, 0
      %p136 = por %p134, %p135
      %p137 = scmp.ne.s32.totalorder %s126, %s129
      %p138 = scmp.eq.s32.totalorder %s27, 1
      %p139 = por %p137, %p138
      %p140 = scmp.ne.s32.totalorder %s129, %s130
      %p141 = scmp.eq.s32.totalorder %s27, 0
      %p142 = por %p140, %p141
      %p143 = scmp.ne.s32.totalorder %s129, %s130
      %p144 = scmp.eq.s32.totalorder %s28, 1
      %p145 = por %p143, %p144
      %p147 = scmp.ne.s32.totalorder %s130, %s146
      %p148 = scmp.eq.s32.totalorder %s28, 0
      %p149 = por %p147, %p148
      %s150 = ssub.s32 %s22, %s29
      %p151 = scmp.eq.s32.totalorder %s150, 0
      %s153 = sadd.s32 %s152, 1
      %s154 = scalar_select %p151, %s152, %s153
      %p157 = pneg %p151
      %p158 = scmp.eq.s32.totalorder %s22, 1
      %p159 = por %p157, %p158
      %p160 = scmp.ne.s32.totalorder %s152, %s155
      %p161 = scmp.eq.s32.totalorder %s22, 0
      %p162 = por %p160, %p161
      %p163 = scmp.ne.s32.totalorder %s152, %s155
      %p164 = scmp.eq.s32.totalorder %s27, 1
      %p165 = por %p163, %p164
      %p166 = scmp.ne.s32.totalorder %s155, %s156
      %p167 = scmp.eq.s32.totalorder %s27, 0
      %p168 = por %p166, %p167
      %p169 = scmp.ne.s32.totalorder %s155, %s156
      %p170 = scmp.eq.s32.totalorder %s28, 1
      %p171 = por %p169, %p170
      %p173 = scmp.ne.s32.totalorder %s156, %s172
      %p174 = scmp.eq.s32.totalorder %s28, 0
      %p175 = por %p173, %p174
      %p176 = scmp.le.s32.totalorder 1, %s22
      %p177 = scmp.lt.s32.totalorder %s22, 3
      %p178 = pnand %p176, %p177
      %p179 = pneg %p178
      // Predicated region
      $region9: #{tpu_custom_call.1} parent=5 // pred_check
        _
      $region10: #{tpu_custom_call.1} parent=5 // pred_check_branch
        %181 = sbr.rel (%p178) target = $region12
      $region11: #{tpu_custom_call.1} parent=5 // pred_region
        %s182 = ssub.s32 %s22, 1
        // Predicated region
        $region13: #{tpu_custom_call.1} parent=11 // pred_check
          %p183 = pneg %p69
        $region14: #{tpu_custom_call.1} parent=11 // pred_check_branch
          %185 = sbr.rel (%p183) target = $region16
        $region15: #{tpu_custom_call.1} parent=11 // pred_region
          %s187 = ssub.s32 6144, 6144
          %188 = vsyncadd [#allocation6], %s187
          %s189 = sshll.u32 [#allocation5], 4
          %s190 = int_to_ptr.vmem [resolvable:$true] %s189
          %195 = dma.hbm_to_vmem [thread:$0]  %s1, 6144, %s190, [#allocation6], 128, 128, 8
        $region16: #{tpu_custom_call.1} parent=11 // pred_fallthru
          _
        // Predicated region
        $region17: #{tpu_custom_call.1} parent=11 // pred_check
          %p196 = pneg %p90
        $region18: #{tpu_custom_call.1} parent=11 // pred_check_branch
          %198 = sbr.rel (%p196) target = $region20
        $region19: #{tpu_custom_call.1} parent=11 // pred_region
          _
        $region20: #{tpu_custom_call.1} parent=11 // pred_fallthru
          _
      $region12: #{tpu_custom_call.1} parent=5 // pred_fallthru
        _
      %p199 = scmp.lt.s32.totalorder %s22, 2
      // Predicated region
      $region21: #{tpu_custom_call.1} parent=5 // pred_check
        %p200 = pneg %p199
      $region22: #{tpu_custom_call.1} parent=5 // pred_check_branch
        %202 = sbr.rel (%p200) target = $region24
      $region23: #{tpu_custom_call.1} parent=5 // pred_region
        // Predicated region
        $region25: #{tpu_custom_call.1} parent=23 // pred_check
          %p203 = pneg %p42
        $region26: #{tpu_custom_call.1} parent=23 // pred_check_branch
          %205 = sbr.rel (%p203) target = $region28
        $region27: #{tpu_custom_call.1} parent=23 // pred_region
          %s206 = sand.u32 %s32, 1
          %s207 = scalar_lea.sflag [#allocation3], %s206
          %s208 = sand.u32 %s32, 1
          %s209 = smul.addr %s208, 16
          %s210 = scalar_lea.vmem [#allocation2], %s209
          %s212 = ssub.s32 256, 256
          %213 = vsyncadd %s207, %s212
          %s214 = smul.addr %s22, 2
          %s215 = smul.addr %s214, 128
          %s216 = scalar_lea.hbm %s0, %s215
          %s217 = sshll.u32 %s210, 4
          %s218 = int_to_ptr.vmem [resolvable:$true] %s217
          %223 = dma.hbm_to_vmem [thread:$0]  %s216, 256, %s218, %s207, 128, 128, 8
        $region28: #{tpu_custom_call.1} parent=23 // pred_fallthru
          _
      $region24: #{tpu_custom_call.1} parent=5 // pred_fallthru
        _
      %p224 = scmp.le.s32.totalorder 1, %s22
      %p225 = scmp.lt.s32.totalorder %s22, 3
      %p226 = pnand %p224, %p225
      %p227 = pneg %p226
      // Predicated region
      $region29: #{tpu_custom_call.1} parent=5 // pred_check
        _
      $region30: #{tpu_custom_call.1} parent=5 // pred_check_branch
        %229 = sbr.rel (%p226) target = $region32
      $region31: #{tpu_custom_call.1} parent=5 // pred_region
        %s230 = ssub.s32 %s22, 1
        %s231 = sand.u32 %s35, 1
        %s232 = scalar_lea.sflag [#allocation3], %s231
        %s233 = sand.u32 %s35, 1
        %s234 = smul.addr %s233, 16
        %s235 = scalar_lea.vmem [#allocation2], %s234
        // Predicated region
        $region33: #{tpu_custom_call.1} parent=31 // pred_check
          %p236 = pneg %p48
        $region34: #{tpu_custom_call.1} parent=31 // pred_check_branch
          %238 = sbr.rel (%p236) target = $region36
        $region35: #{tpu_custom_call.1} parent=31 // pred_region
          %239 = dma.done %s232, 256
        $region36: #{tpu_custom_call.1} parent=31 // pred_fallthru
          _
        // Predicated region
        $region37: #{tpu_custom_call.1} parent=31 // pred_check
          %p240 = pneg %p69
        $region38: #{tpu_custom_call.1} parent=31 // pred_check_branch
          %242 = sbr.rel (%p240) target = $region40
        $region39: #{tpu_custom_call.1} parent=31 // pred_region
          %243 = dma.done [#allocation6], 6144
        $region40: #{tpu_custom_call.1} parent=31 // pred_fallthru
          _
        %s244 = sand.u32 %s35, 1
        %s245 = scalar_lea.sflag [#allocation3], %s244
        %s246 = sand.u32 %s35, 1
        %s247 = smul.addr %s246, 16
        %s248 = scalar_lea.vmem [#allocation2], %s247
        %p249 = pneg %p48
        %p250 = pneg %p45
        %p251 = pneg %p69
        %p252 = pneg %p66
        %p253 = pneg %p90
        %p254 = pneg %p87
        %p255 = pneg %p116
        %p256 = pneg %p113
        %s257 = sand.u32 %s103, 1
        %s258 = scalar_lea.sflag [#allocation4], %s257
        %s259 = sand.u32 %s103, 1
        %s260 = smul.addr %s259, 16
        %s261 = scalar_lea.vmem [#allocation7], %s260
        %p262 = pneg %p142
        %p263 = pneg %p139
        %s264 = sand.u32 %s27, 1
        %s265 = scalar_lea.sflag [#allocation9], %s264
        %s266 = sand.u32 %s129, 1
        %s267 = scalar_lea.vmem [#allocation8], %s266
        %p268 = pneg %p168
        %p269 = pneg %p165
        %s270 = sand.u32 %s27, 1
        %s271 = scalar_lea.sflag [#allocation9], %s270
        %s272 = sand.u32 %s155, 1
        %s273 = scalar_lea.vmem [#allocation10], %s272
        %v274 = vld [vmem:[%s235] sm:$0xff]
        %v275 = vld [vmem:[%s235 + $0x8] sm:$0xff]
        %v276 = vlaneseq
        %v277 = vshrl.u32 %v276, 7
        %v278 = vadd.s32 %v277, 8
        %v279 = vlaneseq
        %v280 = vand.u32 %v279, 127
        %v281 = vadd.s32 %v280, 1
        %vm282 = vcmp.eq.s32.totalorder %v277, %v281
        %vm283 = vcmp.eq.s32.totalorder %v278, %v281
        %v284 = vsel %vm282, 1, 0
        %v285 = vsel %vm283, 1, 0
        %v286 = vcvt.s32.f32 %v284
        %v287 = vcvt.s32.f32 %v285
        %v288 = vsub.s32 %v280, 1
        %vm289 = vcmp.eq.s32.totalorder %v277, %v288
        %vm290 = vcmp.eq.s32.totalorder %v278, %v288
        %v291 = vsel %vm289, 1, 0
        %v292 = vsel %vm290, 1, 0
        %v293 = vcvt.s32.f32 %v291
        %v294 = vcvt.s32.f32 %v292
        %vm295 = vcmask 130048
        %v297 = vsel %vm295, %v286, 0
        %v300 = vsel %vm295, %v287, 0
        %302 = vmatprep.subr.mxu0 0.0
        %303 = vmatpush1.msra.mxu0 %v274
        %304 = vmatprep.subr.mxu0 0.0
        %305 = vmatpush1.msra.mxu0 %v275
        %306 = vmatprep.subr.mxu0 0.0
        %307 = vmatpush1.msra.mxu0 0.0
        %308 = vmatprep.subr.mxu0 0.0
        %309 = vmatpush1.msra.mxu0 0.0
        %310 = vmatprep.subr.mxu0 0.0
        %311 = vmatpush1.msra.mxu0 0.0
        %312 = vmatprep.subr.mxu0 0.0
        %313 = vmatpush1.msra.mxu0 0.0
        %314 = vmatprep.subr.mxu0 0.0
        %315 = vmatpush1.msra.mxu0 0.0
        %316 = vmatprep.subr.mxu0 0.0
        %317 = vmatpush1.msra.mxu0 0.0
        %318 = vmatprep.subr.mxu0 0.0
        %319 = vmatpush1.msra.mxu0 0.0
        %320 = vmatprep.subr.mxu0 0.0
        %321 = vmatpush1.msra.mxu0 0.0
        %322 = vmatprep.subr.mxu0 0.0
        %323 = vmatpush1.msra.mxu0 0.0
        %324 = vmatprep.subr.mxu0 0.0
        %325 = vmatpush1.msra.mxu0 0.0
        %326 = vmatprep.subr.mxu0 0.0
        %327 = vmatpush1.msra.mxu0 0.0
        %328 = vmatprep.subr.mxu0 0.0
        %329 = vmatpush1.msra.mxu0 0.0
        %330 = vmatprep.subr.mxu0 0.0
        %331 = vmatpush1.msra.mxu0 0.0
        %332 = vmatprep.subr.mxu0 0.0
        %333 = vmatpush1.msra.mxu0 0.0
        %334 = vmatprep.subr.mxu0 0.0
        %335 = vmatpush1.msra.mxu0 0.0
        %336 = vmatprep.subr.mxu0 0.0
        %337 = vmatpush1.msra.mxu0 0.0
        %338 = vmatprep.subr.mxu0 0.0
        %339 = vmatpush1.msra.mxu0 0.0
        %340 = vmatprep.subr.mxu0 0.0
        %341 = vmatpush1.msra.mxu0 0.0
        %342 = vmatprep.subr.mxu0 0.0
        %343 = vmatpush1.msra.mxu0 0.0
        %344 = vmatprep.subr.mxu0 0.0
        %345 = vmatpush1.msra.mxu0 0.0
        %346 = vmatprep.subr.mxu0 0.0
        %347 = vmatpush1.msra.mxu0 0.0
        %348 = vmatprep.subr.mxu0 0.0
        %349 = vmatpush1.msra.mxu0 0.0
        %350 = vmatprep.subr.mxu0 0.0
        %351 = vmatpush1.msra.mxu0 0.0
        %352 = vmatprep.subr.mxu0 0.0
        %353 = vmatpush1.msra.mxu0 0.0
        %354 = vmatprep.subr.mxu0 0.0
        %355 = vmatpush1.msra.mxu0 0.0
        %356 = vmatprep.subr.mxu0 0.0
        %357 = vmatpush1.msra.mxu0 0.0
        %358 = vmatprep.subr.mxu0 0.0
        %359 = vmatpush1.msra.mxu0 0.0
        %360 = vmatprep.subr.mxu0 0.0
        %361 = vmatpush1.msra.mxu0 0.0
        %362 = vmatprep.subr.mxu0 0.0
        %363 = vmatpush1.msra.mxu0 0.0
        %364 = vmatprep.subr.mxu0 0.0
        %365 = vmatpush1.msra.mxu0 0.0
        %366 = vmatprep.mubr.f32.mxu0 0.0
        %367 = vmatmul.mubr.f32.gmra.mrb[0].mxu0 %v297
        %v368 = vpop.f32.mrb[0].mxu0
        %v369 = vadd.f32 0.0, %v368
        %v370 = vpop.f32.mrb[0].mxu0
        %371 = vmatprep.mubr.f32.mxu0 0.0
        %372 = vmatmul.mubr.f32.gmra.mrb[0].mxu0 %v300
        %v373 = vpop.f32.mrb[0].mxu0
        %v374 = vadd.f32 0.0, %v373
        %v375 = vpop.f32.mrb[0].mxu0
        %376 = vdwg.mxu0
        %v378 = vsel %vm295, %v293, 0
        %v381 = vsel %vm295, %v294, 0
        %383 = vmatprep.subr.mxu0 0.0
        %384 = vmatpush1.msra.mxu0 %v274
        %385 = vmatprep.subr.mxu0 0.0
        %386 = vmatpush1.msra.mxu0 %v275
        %387 = vmatprep.subr.mxu0 0.0
        %388 = vmatpush1.msra.mxu0 0.0
        %389 = vmatprep.subr.mxu0 0.0
        %390 = vmatpush1.msra.mxu0 0.0
        %391 = vmatprep.subr.mxu0 0.0
        %392 = vmatpush1.msra.mxu0 0.0
        %393 = vmatprep.subr.mxu0 0.0
        %394 = vmatpush1.msra.mxu0 0.0
        %395 = vmatprep.subr.mxu0 0.0
        %396 = vmatpush1.msra.mxu0 0.0
        %397 = vmatprep.subr.mxu0 0.0
        %398 = vmatpush1.msra.mxu0 0.0
        %399 = vmatprep.subr.mxu0 0.0
        %400 = vmatpush1.msra.mxu0 0.0
        %401 = vmatprep.subr.mxu0 0.0
        %402 = vmatpush1.msra.mxu0 0.0
        %403 = vmatprep.subr.mxu0 0.0
        %404 = vmatpush1.msra.mxu0 0.0
        %405 = vmatprep.subr.mxu0 0.0
        %406 = vmatpush1.msra.mxu0 0.0
        %407 = vmatprep.subr.mxu0 0.0
        %408 = vmatpush1.msra.mxu0 0.0
        %409 = vmatprep.subr.mxu0 0.0
        %410 = vmatpush1.msra.mxu0 0.0
        %411 = vmatprep.subr.mxu0 0.0
        %412 = vmatpush1.msra.mxu0 0.0
        %413 = vmatprep.subr.mxu0 0.0
        %414 = vmatpush1.msra.mxu0 0.0
        %415 = vmatprep.subr.mxu0 0.0
        %416 = vmatpush1.msra.mxu0 0.0
        %417 = vmatprep.subr.mxu0 0.0
        %418 = vmatpush1.msra.mxu0 0.0
        %419 = vmatprep.subr.mxu0 0.0
        %420 = vmatpush1.msra.mxu0 0.0
        %421 = vmatprep.subr.mxu0 0.0
        %422 = vmatpush1.msra.mxu0 0.0
        %423 = vmatprep.subr.mxu0 0.0
        %424 = vmatpush1.msra.mxu0 0.0
        %425 = vmatprep.subr.mxu0 0.0
        %426 = vmatpush1.msra.mxu0 0.0
        %427 = vmatprep.subr.mxu0 0.0
        %428 = vmatpush1.msra.mxu0 0.0
        %429 = vmatprep.subr.mxu0 0.0
        %430 = vmatpush1.msra.mxu0 0.0
        %431 = vmatprep.subr.mxu0 0.0
        %432 = vmatpush1.msra.mxu0 0.0
        %433 = vmatprep.subr.mxu0 0.0
        %434 = vmatpush1.msra.mxu0 0.0
        %435 = vmatprep.subr.mxu0 0.0
        %436 = vmatpush1.msra.mxu0 0.0
        %437 = vmatprep.subr.mxu0 0.0
        %438 = vmatpush1.msra.mxu0 0.0
        %439 = vmatprep.subr.mxu0 0.0
        %440 = vmatpush1.msra.mxu0 0.0
        %441 = vmatprep.subr.mxu0 0.0
        %442 = vmatpush1.msra.mxu0 0.0
        %443 = vmatprep.subr.mxu0 0.0
        %444 = vmatpush1.msra.mxu0 0.0
        %445 = vmatprep.subr.mxu0 0.0
        %446 = vmatpush1.msra.mxu0 0.0
        %447 = vmatprep.mubr.f32.mxu0 0.0
        %448 = vmatmul.mubr.f32.gmra.mrb[0].mxu0 %v378
        %v449 = vpop.f32.mrb[0].mxu0
        %v450 = vadd.f32 0.0, %v449
        %v451 = vpop.f32.mrb[0].mxu0
        %452 = vmatprep.mubr.f32.mxu0 0.0
        %453 = vmatmul.mubr.f32.gmra.mrb[0].mxu0 %v381
        %v454 = vpop.f32.mrb[0].mxu0
        %v455 = vadd.f32 0.0, %v454
        %v456 = vpop.f32.mrb[0].mxu0
        %457 = vdwg.mxu0
        %v458 = vld [vmem:[#allocation5] sm:$0xff]
        %v459 = vld [vmem:[#allocation5 + $0x8] sm:$0xff]
        %v460 = vld [vmem:[#allocation5 + $0x10] sm:$0xff]
        %v461 = vld [vmem:[#allocation5 + $0x18] sm:$0xff]
        %v462 = vld [vmem:[#allocation5 + $0x20] sm:$0xff]
        %v463 = vld [vmem:[#allocation5 + $0x28] sm:$0xff]
        %v464 = vld [vmem:[#allocation5 + $0x30] sm:$0xff]
        %v465 = vld [vmem:[#allocation5 + $0x38] sm:$0xff]
        %v466 = vld [vmem:[#allocation5 + $0x40] sm:$0xff]
        %v467 = vld [vmem:[#allocation5 + $0x48] sm:$0xff]
        %v468 = vld [vmem:[#allocation5 + $0x50] sm:$0xff]
        %v469 = vld [vmem:[#allocation5 + $0x58] sm:$0xff]
        %v470 = vld [vmem:[#allocation5 + $0x60] sm:$0xff]
        %v471 = vld [vmem:[#allocation5 + $0x68] sm:$0xff]
        %v472 = vld [vmem:[#allocation5 + $0x70] sm:$0xff]
        %v473 = vld [vmem:[#allocation5 + $0x78] sm:$0xff]
        %v474 = vld [vmem:[#allocation5 + $0x80] sm:$0xff]
        %v475 = vld [vmem:[#allocation5 + $0x88] sm:$0xff]
        %v476 = vld [vmem:[#allocation5 + $0x90] sm:$0xff]
        %v477 = vld [vmem:[#allocation5 + $0x98] sm:$0xff]
        %v478 = vld [vmem:[#allocation5 + $0xa0] sm:$0xff]
        %v479 = vld [vmem:[#allocation5 + $0xa8] sm:$0xff]
        %v480 = vld [vmem:[#allocation5 + $0xb0] sm:$0xff]
        %v481 = vld [vmem:[#allocation5 + $0xb8] sm:$0xff]
        %v482 = vld [vmem:[#allocation5 + $0xc0] sm:$0xff]
        %v483 = vld [vmem:[#allocation5 + $0xc8] sm:$0xff]
        %v484 = vld [vmem:[#allocation5 + $0xd0] sm:$0xff]
        %v485 = vld [vmem:[#allocation5 + $0xd8] sm:$0xff]
        %v486 = vld [vmem:[#allocation5 + $0xe0] sm:$0xff]
        %v487 = vld [vmem:[#allocation5 + $0xe8] sm:$0xff]
        %v488 = vld [vmem:[#allocation5 + $0xf0] sm:$0xff]
        %v489 = vld [vmem:[#allocation5 + $0xf8] sm:$0xff]
        %v490 = vld [vmem:[#allocation5 + $0x100] sm:$0xff]
        %v491 = vld [vmem:[#allocation5 + $0x108] sm:$0xff]
        %v492 = vld [vmem:[#allocation5 + $0x110] sm:$0xff]
        %v493 = vld [vmem:[#allocation5 + $0x118] sm:$0xff]
        %v494 = vld [vmem:[#allocation5 + $0x120] sm:$0xff]
        %v495 = vld [vmem:[#allocation5 + $0x128] sm:$0xff]
        %v496 = vld [vmem:[#allocation5 + $0x130] sm:$0xff]
        %v497 = vld [vmem:[#allocation5 + $0x138] sm:$0xff]
        %v498 = vld [vmem:[#allocation5 + $0x140] sm:$0xff]
        %v499 = vld [vmem:[#allocation5 + $0x148] sm:$0xff]
        %v500 = vld [vmem:[#allocation5 + $0x150] sm:$0xff]
        %v501 = vld [vmem:[#allocation5 + $0x158] sm:$0xff]
        %v502 = vld [vmem:[#allocation5 + $0x160] sm:$0xff]
        %v503 = vld [vmem:[#allocation5 + $0x168] sm:$0xff]
        %v504 = vld [vmem:[#allocation5 + $0x170] sm:$0xff]
        %v505 = vld [vmem:[#allocation5 + $0x178] sm:$0xff]
        %v506 = vld [vmem:[%s2] sm:$0x1]
        %v508 = vlaneseq
        %v509 = vshrl.u32 %v508, 7
        %v510 = vsub.s32 0, %v509
        %v511 = vrot.slane %v506, %v510
        %513 = vmatprep.subr.mxu0 0.0
        %514 = vmatpush1.msra.mxu0 %v458
        %515 = vmatprep.subr.mxu0 0.0
        %516 = vmatpush1.msra.mxu0 %v459
        %517 = vmatprep.subr.mxu0 0.0
        %518 = vmatpush1.msra.mxu0 %v460
        %519 = vmatprep.subr.mxu0 0.0
        %520 = vmatpush1.msra.mxu0 %v461
        %521 = vmatprep.subr.mxu0 0.0
        %522 = vmatpush1.msra.mxu0 %v462
        %523 = vmatprep.subr.mxu0 0.0
        %524 = vmatpush1.msra.mxu0 %v463
        %525 = vmatprep.subr.mxu0 0.0
        %526 = vmatpush1.msra.mxu0 %v464
        %527 = vmatprep.subr.mxu0 0.0
        %528 = vmatpush1.msra.mxu0 %v465
        %529 = vmatprep.subr.mxu0 0.0
        %530 = vmatpush1.msra.mxu0 %v466
        %531 = vmatprep.subr.mxu0 0.0
        %532 = vmatpush1.msra.mxu0 %v467
        %533 = vmatprep.subr.mxu0 0.0
        %534 = vmatpush1.msra.mxu0 %v468
        %535 = vmatprep.subr.mxu0 0.0
        %536 = vmatpush1.msra.mxu0 %v469
        %537 = vmatprep.subr.mxu0 0.0
        %538 = vmatpush1.msra.mxu0 %v470
        %539 = vmatprep.subr.mxu0 0.0
        %540 = vmatpush1.msra.mxu0 %v471
        %541 = vmatprep.subr.mxu0 0.0
        %542 = vmatpush1.msra.mxu0 %v472
        %543 = vmatprep.subr.mxu0 0.0
        %544 = vmatpush1.msra.mxu0 %v473
        %545 = vmatprep.subr.mxu0 0.0
        %546 = vmatpush1.msra.mxu0 %v474
        %547 = vmatprep.subr.mxu0 0.0
        %548 = vmatpush1.msra.mxu0 %v475
        %549 = vmatprep.subr.mxu0 0.0
        %550 = vmatpush1.msra.mxu0 %v476
        %551 = vmatprep.subr.mxu0 0.0
        %552 = vmatpush1.msra.mxu0 %v477
        %553 = vmatprep.subr.mxu0 0.0
        %554 = vmatpush1.msra.mxu0 %v478
        %555 = vmatprep.subr.mxu0 0.0
        %556 = vmatpush1.msra.mxu0 %v479
        %557 = vmatprep.subr.mxu0 0.0
        %558 = vmatpush1.msra.mxu0 %v480
        %559 = vmatprep.subr.mxu0 0.0
        %560 = vmatpush1.msra.mxu0 %v481
        %561 = vmatprep.subr.mxu0 0.0
        %562 = vmatpush1.msra.mxu0 %v482
        %563 = vmatprep.subr.mxu0 0.0
        %564 = vmatpush1.msra.mxu0 %v483
        %565 = vmatprep.subr.mxu0 0.0
        %566 = vmatpush1.msra.mxu0 %v484
        %567 = vmatprep.subr.mxu0 0.0
        %568 = vmatpush1.msra.mxu0 %v485
        %569 = vmatprep.subr.mxu0 0.0
        %570 = vmatpush1.msra.mxu0 %v486
        %571 = vmatprep.subr.mxu0 0.0
        %572 = vmatpush1.msra.mxu0 %v487
        %573 = vmatprep.subr.mxu0 0.0
        %574 = vmatpush1.msra.mxu0 %v488
        %575 = vmatprep.subr.mxu0 0.0
        %576 = vmatpush1.msra.mxu0 %v489
        %577 = vmatprep.mubr.f32.mxu0 %v274
        %578 = vmatmul.mubr.f32.gmra.mrb[0].mxu0 %v369
        %v579 = vpop.f32.mrb[0].mxu0
        %v580 = vadd.f32 %v511, %v579
        %v581 = vpop.f32.mrb[0].mxu0
        %582 = vmatprep.mubr.f32.mxu0 %v275
        %583 = vmatmul.mubr.f32.gmra.mrb[0].mxu0 %v374
        %v584 = vpop.f32.mrb[0].mxu0
        %v585 = vadd.f32 %v511, %v584
        %v586 = vpop.f32.mrb[0].mxu0
        %587 = vdwg.mxu0
        %588 = vmatprep.subr.mxu0 0.0
        %589 = vmatpush1.msra.mxu0 %v490
        %590 = vmatprep.subr.mxu0 0.0
        %591 = vmatpush1.msra.mxu0 %v491
        %592 = vmatprep.subr.mxu0 0.0
        %593 = vmatpush1.msra.mxu0 %v492
        %594 = vmatprep.subr.mxu0 0.0
        %595 = vmatpush1.msra.mxu0 %v493
        %596 = vmatprep.subr.mxu0 0.0
        %597 = vmatpush1.msra.mxu0 %v494
        %598 = vmatprep.subr.mxu0 0.0
        %599 = vmatpush1.msra.mxu0 %v495
        %600 = vmatprep.subr.mxu0 0.0
        %601 = vmatpush1.msra.mxu0 %v496
        %602 = vmatprep.subr.mxu0 0.0
        %603 = vmatpush1.msra.mxu0 %v497
        %604 = vmatprep.subr.mxu0 0.0
        %605 = vmatpush1.msra.mxu0 %v498
        %606 = vmatprep.subr.mxu0 0.0
        %607 = vmatpush1.msra.mxu0 %v499
        %608 = vmatprep.subr.mxu0 0.0
        %609 = vmatpush1.msra.mxu0 %v500
        %610 = vmatprep.subr.mxu0 0.0
        %611 = vmatpush1.msra.mxu0 %v501
        %612 = vmatprep.subr.mxu0 0.0
        %613 = vmatpush1.msra.mxu0 %v502
        %614 = vmatprep.subr.mxu0 0.0
        %615 = vmatpush1.msra.mxu0 %v503
        %616 = vmatprep.subr.mxu0 0.0
        %617 = vmatpush1.msra.mxu0 %v504
        %618 = vmatprep.subr.mxu0 0.0
        %619 = vmatpush1.msra.mxu0 %v505
        %620 = vmatprep.subr.mxu0 0.0
        %621 = vmatpush1.msra.mxu0 0.0
        %622 = vmatprep.subr.mxu0 0.0
        %623 = vmatpush1.msra.mxu0 0.0
        %624 = vmatprep.subr.mxu0 0.0
        %625 = vmatpush1.msra.mxu0 0.0
        %626 = vmatprep.subr.mxu0 0.0
        %627 = vmatpush1.msra.mxu0 0.0
        %628 = vmatprep.subr.mxu0 0.0
        %629 = vmatpush1.msra.mxu0 0.0
        %630 = vmatprep.subr.mxu0 0.0
        %631 = vmatpush1.msra.mxu0 0.0
        %632 = vmatprep.subr.mxu0 0.0
        %633 = vmatpush1.msra.mxu0 0.0
        %634 = vmatprep.subr.mxu0 0.0
        %635 = vmatpush1.msra.mxu0 0.0
        %636 = vmatprep.subr.mxu0 0.0
        %637 = vmatpush1.msra.mxu0 0.0
        %638 = vmatprep.subr.mxu0 0.0
        %639 = vmatpush1.msra.mxu0 0.0
        %640 = vmatprep.subr.mxu0 0.0
        %641 = vmatpush1.msra.mxu0 0.0
        %642 = vmatprep.subr.mxu0 0.0
        %643 = vmatpush1.msra.mxu0 0.0
        %644 = vmatprep.subr.mxu0 0.0
        %645 = vmatpush1.msra.mxu0 0.0
        %646 = vmatprep.subr.mxu0 0.0
        %647 = vmatpush1.msra.mxu0 0.0
        %648 = vmatprep.subr.mxu0 0.0
        %649 = vmatpush1.msra.mxu0 0.0
        %650 = vmatprep.subr.mxu0 0.0
        %651 = vmatpush1.msra.mxu0 0.0
        %652 = vmatprep.mubr.f32.mxu0 0.0
        %653 = vmatmul.mubr.f32.gmra.mrb[0].mxu0 %v450
        %v654 = vpop.f32.mrb[0].mxu0
        %v655 = vadd.f32 %v580, %v654
        %v656 = vpop.f32.mrb[0].mxu0
        %657 = vmatprep.mubr.f32.mxu0 0.0
        %658 = vmatmul.mubr.f32.gmra.mrb[0].mxu0 %v455
        %v659 = vpop.f32.mrb[0].mxu0
        %v660 = vadd.f32 %v585, %v659
        %v661 = vpop.f32.mrb[0].mxu0
        %662 = vdwg.mxu0
        %663 = vst [vmem:[%s261] sm:$0xff] %v655
        %664 = vst [vmem:[%s261 + $0x8] sm:$0xff] %v660
        %v665 = vadd.f32 %v655, %v660
        %v666 = vrot.slane %v665, 4
        %v667 = vadd.f32 %v665, %v666
        %v668 = vrot.slane %v667, 2
        %v669 = vadd.f32 %v667, %v668
        %v670 = vrot.slane %v669, 1
        %v671 = vadd.f32 %v669, %v670
        %672 = vst [vmem:[%s267] sm:$0x1] %v671
        %v673 = vmul.f32 %v655, %v655
        %v674 = vmul.f32 %v660, %v660
        %v675 = vadd.f32 %v673, %v674
        %v676 = vrot.slane %v675, 4
        %v677 = vadd.f32 %v675, %v676
        %v678 = vrot.slane %v677, 2
        %v679 = vadd.f32 %v677, %v678
        %v680 = vrot.slane %v679, 1
        %v681 = vadd.f32 %v679, %v680
        %682 = vst [vmem:[%s273] sm:$0x1] %v681
        %s683 = sand.u32 %s103, 1
        %s684 = scalar_lea.sflag [#allocation4], %s683
        %s685 = sand.u32 %s103, 1
        %s686 = smul.addr %s685, 16
        %s687 = scalar_lea.vmem [#allocation7], %s686
        %s688 = sand.u32 %s27, 1
        %s689 = scalar_lea.sflag [#allocation9], %s688
        %s690 = sand.u32 %s129, 1
        %s691 = scalar_lea.vmem [#allocation8], %s690
        %s692 = sand.u32 %s27, 1
        %s693 = scalar_lea.sflag [#allocation9], %s692
        %s694 = sand.u32 %s155, 1
        %s695 = scalar_lea.vmem [#allocation10], %s694
        // Predicated region
        $region41: #{tpu_custom_call.1} parent=31 // pred_check
          %p696 = pneg %p113
        $region42: #{tpu_custom_call.1} parent=31 // pred_check_branch
          %698 = sbr.rel (%p696) target = $region44
        $region43: #{tpu_custom_call.1} parent=31 // pred_region
          %s700 = ssub.s32 256, 256
          %701 = vsyncadd %s684, %s700
          %s702 = smul.addr %s27, 2
          %s703 = smul.addr %s702, 128
          %s704 = scalar_lea.hbm %s3, %s703
          %s705 = sshll.u32 %s687, 4
          %s706 = int_to_ptr.vmem [resolvable:$true] %s705
          %711 = dma.vmem_to_hbm [thread:$0]  %s706, 256, %s704, %s684, 128, 128, 8
        $region44: #{tpu_custom_call.1} parent=31 // pred_fallthru
          _
        // Predicated region
        $region45: #{tpu_custom_call.1} parent=31 // pred_check
          %p712 = pneg %p139
        $region46: #{tpu_custom_call.1} parent=31 // pred_check_branch
          %714 = sbr.rel (%p712) target = $region48
        $region47: #{tpu_custom_call.1} parent=31 // pred_region
          %s716 = ssub.s32 16, 16
          %717 = vsyncadd %s689, %s716
          %s718 = smul.addr %s27, 16
          %s719 = scalar_lea.hbm %s4, %s718
          %s721 = sshll.u32 %s691, 4
          %s722 = int_to_ptr.vmem [resolvable:$true] %s721
          %724 = dma.vmem_to_hbm [thread:$0]  %s722, 16, %s719, %s689
        $region48: #{tpu_custom_call.1} parent=31 // pred_fallthru
          _
        // Predicated region
        $region49: #{tpu_custom_call.1} parent=31 // pred_check
          %p725 = pneg %p165
        $region50: #{tpu_custom_call.1} parent=31 // pred_check_branch
          %727 = sbr.rel (%p725) target = $region52
        $region51: #{tpu_custom_call.1} parent=31 // pred_region
          %s729 = ssub.s32 16, 16
          %730 = vsyncadd %s693, %s729
          %s731 = smul.addr %s27, 16
          %s732 = scalar_lea.hbm %s5, %s731
          %s734 = sshll.u32 %s695, 4
          %s735 = int_to_ptr.vmem [resolvable:$true] %s734
          %737 = dma.vmem_to_hbm [thread:$0]  %s735, 16, %s732, %s693
        $region52: #{tpu_custom_call.1} parent=31 // pred_fallthru
          _
      $region32: #{tpu_custom_call.1} parent=5 // pred_fallthru
        _
      %p738 = scmp.le.s32.totalorder 2, %s22
      // Predicated region
      $region53: #{tpu_custom_call.1} parent=5 // pred_check
        %p739 = pneg %p738
      $region54: #{tpu_custom_call.1} parent=5 // pred_check_branch
        %741 = sbr.rel (%p739) target = $region56
      $region55: #{tpu_custom_call.1} parent=5 // pred_region
        %s742 = ssub.s32 %s22, 2
        // Predicated region
        $region57: #{tpu_custom_call.1} parent=55 // pred_check
          %p743 = pneg %p119
        $region58: #{tpu_custom_call.1} parent=55 // pred_check_branch
          %745 = sbr.rel (%p743) target = $region60
        $region59: #{tpu_custom_call.1} parent=55 // pred_region
          %s746 = sand.u32 %s104, 1
          %s747 = scalar_lea.sflag [#allocation4], %s746
          %s748 = sand.u32 %s104, 1
          %s749 = smul.addr %s748, 16
          %s750 = scalar_lea.vmem [#allocation7], %s749
          %751 = dma.done %s747, 256
        $region60: #{tpu_custom_call.1} parent=55 // pred_fallthru
          _
        // Predicated region
        $region61: #{tpu_custom_call.1} parent=55 // pred_check
          %p752 = pneg %p145
        $region62: #{tpu_custom_call.1} parent=55 // pred_check_branch
          %754 = sbr.rel (%p752) target = $region64
        $region63: #{tpu_custom_call.1} parent=55 // pred_region
          %s755 = sand.u32 %s28, 1
          %s756 = scalar_lea.sflag [#allocation9], %s755
          %s757 = sand.u32 %s130, 1
          %s758 = scalar_lea.vmem [#allocation8], %s757
          %759 = dma.done %s756, 16
        $region64: #{tpu_custom_call.1} parent=55 // pred_fallthru
          _
        // Predicated region
        $region65: #{tpu_custom_call.1} parent=55 // pred_check
          %p760 = pneg %p171
        $region66: #{tpu_custom_call.1} parent=55 // pred_check_branch
          %762 = sbr.rel (%p760) target = $region68
        $region67: #{tpu_custom_call.1} parent=55 // pred_region
          %s763 = sand.u32 %s28, 1
          %s764 = scalar_lea.sflag [#allocation9], %s763
          %s765 = sand.u32 %s156, 1
          %s766 = scalar_lea.vmem [#allocation10], %s765
          %767 = dma.done %s764, 16
        $region68: #{tpu_custom_call.1} parent=55 // pred_fallthru
          _
      $region56: #{tpu_custom_call.1} parent=5 // pred_fallthru
        _
    $region6: #{tpu_custom_call.1} parent=1 // loop_footer
      %s26 = sadd.s32 1, %s22
    $region7: #{tpu_custom_call.1} parent=1 // loop_footer_branch
      %21 = sbr.rel target = $region3
    $region8: #{tpu_custom_call.1} parent=1 // loop_exit
      _
    %768 = vsyncpa [#allocation3], 1
    %s769 = scalar_lea.sflag [#allocation3], 1
    %770 = vsyncpa %s769, 1
    %771 = vsyncpa [#allocation6], 1
    %772 = vsyncpa [#allocation4], 1
    %s773 = scalar_lea.sflag [#allocation4], 1
    %774 = vsyncpa %s773, 1
    %775 = vsyncpa [#allocation9], 1
    %s776 = scalar_lea.sflag [#allocation9], 1
    %777 = vsyncpa %s776, 1

</llo_original>
